<compile_context>
chip_gen: v7x
topology: tpu7x:2x2x1
jax: 0.10.0
libtpu: 0.0.40
codegen_flags: <defaults>
</compile_context>

<pallas_src>
import functools

import jax
import jax.numpy as jnp
from jax.experimental import pallas as pl
from jax.experimental.pallas import tpu as pltpu

LANES = 128
SUBLANES = 8
MAX_TILE_ROWS = 1024        # (1024, 128) f32 tile = 512 KiB/buffer -> safe on v5e/v6e/v7x
THRESHOLD = 1.0
DELTA = 0.05
RAND_BITS = 24              # resolution of the integer keep test


def _round_up(a, b):
    return (a + b - 1) // b * b


def _adaptive_dropout_kernel(p_old_ref, x_ref, bits_ref,          # inputs
                             out_ref, p_new_ref,                  # outputs
                             sum_acc_ref, sq_acc_ref, scale_ref, thresh_ref,  # scratch
                             *, n_valid, min_p, max_p):
    """Two-phase grid: grid = (2, num_row_tiles).

    phase 0: accumulate per-lane partial sum / sum-of-squares of x (in f32);
             on the last tile compute the unbiased variance, update p, and
             derive the integer keep-threshold and survivor scale.
    phase 1: apply dropout: one int32 compare + select per element.
    """
    phase = pl.program_id(0)
    i = pl.program_id(1)
    n_tiles = pl.num_programs(1)

    # ---------------- phase 0: variance reduction ----------------
    @pl.when(phase == 0)
    def _reduce():
        @pl.when(i == 0)
        def _init():
            sum_acc_ref[...] = jnp.zeros_like(sum_acc_ref)
            sq_acc_ref[...] = jnp.zeros_like(sq_acc_ref)

        xf = x_ref[...].astype(jnp.float32)
        # per-lane partials (sublane reduction); keeps everything vectorized.
        sum_acc_ref[...] = sum_acc_ref[...] + jnp.sum(xf, axis=0, keepdims=True)
        sq_acc_ref[...] = sq_acc_ref[...] + jnp.sum(xf * xf, axis=0, keepdims=True)

        @pl.when(i == n_tiles - 1)
        def _finalize():
            n = jnp.float32(n_valid)
            s = jnp.sum(sum_acc_ref[...], axis=1, keepdims=True)    # (1, 1)
            sq = jnp.sum(sq_acc_ref[...], axis=1, keepdims=True)    # (1, 1)
            mean = s / n
            # unbiased variance, matches torch.Tensor.var()
            var = (sq - n * mean * mean) / (n - jnp.float32(1.0))

            p_old = p_old_ref[0]
            p_dec = jnp.maximum(jnp.float32(min_p), p_old - jnp.float32(DELTA))
            p_inc = jnp.minimum(jnp.float32(max_p), p_old + jnp.float32(DELTA))
            p_new = jnp.where(var > jnp.float32(THRESHOLD), p_dec, p_inc)    # (1, 1)

            p_new_ref[...] = p_new
            scale_ref[...] = jnp.float32(1.0) / (jnp.float32(1.0) - p_new)
            thresh_ref[...] = (p_new * jnp.float32(1 << RAND_BITS)).astype(jnp.int32)

    # ---------------- phase 1: apply dropout ----------------
    @pl.when(phase == 1)
    def _dropout():
        x = x_ref[...]
        keep = bits_ref[...] >= thresh_ref[...]          # single int compare / element
        scale = scale_ref[...].astype(x.dtype)           # elementwise path stays in x's dtype
        out_ref[...] = jnp.where(keep, x * scale, jnp.zeros_like(x)).astype(out_ref.dtype)


def adaptive_dropout_pallas(x, p, key, *, min_p=0.1, max_p=0.5, training=True):
    """Returns (dropped_x, new_p). new_p is a device scalar (no host sync)."""
    if not training:
        return x, jnp.asarray(p, jnp.float32).reshape(())

    orig_shape = x.shape
    n = x.size

    # Flatten row-major to a lane-dense (rows, 128) slab; pad with zeros so the
    # row count is a multiple of the tile height (zeros do not affect sum/sumsq).
    rows = pl.cdiv(n, LANES)
    tile_rows = min(MAX_TILE_ROWS, _round_up(rows, SUBLANES))
    padded_rows = _round_up(rows, tile_rows)
    n_tiles = padded_rows // tile_rows
    padded_n = padded_rows * LANES

    x_flat = x.reshape(-1)
    if padded_n != n:
        x_flat = jnp.pad(x_flat, (0, padded_n - n))
    x2 = x_flat.reshape(padded_rows, LANES)

    # Pre-generated 24-bit random integers (portable across TPU + interpret mode).
    bits = jax.random.bits(key, (padded_rows, LANES), dtype=jnp.uint32)
    bits24 = (bits >> jnp.uint32(32 - RAND_BITS)).astype(jnp.int32)

    p_arr = jnp.asarray(p, jnp.float32).reshape(1)

    # VMEM budget from actual tile buffers (x, bits, out; double-buffered) + headroom.
    tile_bytes = tile_rows * LANES * 4
    vmem_limit = int(min(48 * 1024 * 1024, max(4 * 1024 * 1024, 12 * tile_bytes)))

    kernel = functools.partial(
        _adaptive_dropout_kernel, n_valid=n, min_p=float(min_p), max_p=float(max_p))

    out2, p_new = pl.pallas_call(
        kernel,
        out_shape=(
            jax.ShapeDtypeStruct((padded_rows, LANES), x.dtype),
            jax.ShapeDtypeStruct((1, 1), jnp.float32),
        ),
        grid_spec=pltpu.PrefetchScalarGridSpec(
            num_scalar_prefetch=0,
            grid=(2, n_tiles),
            in_specs=[
                pl.BlockSpec(memory_space=pltpu.MemorySpace.SMEM),             # current p
                pl.BlockSpec((tile_rows, LANES), lambda ph, i: (i, 0)),        # x (both phases)
                pl.BlockSpec((tile_rows, LANES), lambda ph, i: (ph * i, 0)),   # bits (phase 1)
            ],
            out_specs=(
                pl.BlockSpec((tile_rows, LANES), lambda ph, i: (ph * i, 0)),   # dropout output
                pl.BlockSpec((1, 1), lambda ph, i: (0, 0)),                    # updated p
            ),
            scratch_shapes=[
                pltpu.VMEM((1, LANES), jnp.float32),   # per-lane partial sums
                pltpu.VMEM((1, LANES), jnp.float32),   # per-lane partial sums of squares
                pltpu.VMEM((1, 1), jnp.float32),       # survivor scale 1/(1-p_new)
                pltpu.VMEM((1, 1), jnp.int32),         # integer keep threshold
            ],
        ),
        compiler_params=pltpu.CompilerParams(
            # both axes carry cross-iteration state (scratch accumulation / phase order)
            dimension_semantics=("arbitrary", "arbitrary"),
            vmem_limit_bytes=vmem_limit,
        ),
    )(p_arr, x2, bits24)

    out = out2.reshape(-1)[:n].reshape(orig_shape)
    return out, p_new[0, 0]


class AdaptiveDropout:
    """Stateful wrapper mirroring the PyTorch module; p stays device-resident."""

    def __init__(self, initial_p=0.5, max_p=0.5, min_p=0.1):
        self.initial_p = initial_p
        self.max_p = max_p
        self.min_p = min_p
        self.p = jnp.float32(initial_p)     # device scalar, no per-call host sync
        self.training = True

    def __call__(self, x, key):
        if not self.training:
            return x
        out, new_p = adaptive_dropout_pallas(
            x, self.p, key, min_p=self.min_p, max_p=self.max_p, training=True)
        self.p = new_p
        return out


if __name__ == "__main__":
    key = jax.random.PRNGKey(0)
    data_key, drop_key = jax.random.split(key)
    # Small NCHW-style input: batch=2, channels=4, spatial=16x16.  var ~ 4 > 1.
    x = 2.0 * jax.random.normal(data_key, (2, 4, 16, 16), dtype=jnp.float32)

    mod = AdaptiveDropout()
    out = jax.block_until_ready(mod(x, drop_key))

    # Sanity checks of dropout semantics.
    assert out.shape == x.shape and out.dtype == x.dtype
    p_host = float(mod.p)                       # single readback, test only
    # var(x) > 1 -> p should have dropped from 0.5 to 0.45
    assert abs(p_host - 0.45) < 1e-6, p_host
    # Survivors must equal x / (1 - p); dropped entries are exactly zero.
    mask = out != 0.0
    expected = x / (1.0 - p_host)
    assert bool(jnp.allclose(jnp.where(mask, out, 0.0),
                             jnp.where(mask, expected, 0.0), rtol=1e-5, atol=1e-5))
    drop_frac = 1.0 - float(jnp.mean(mask.astype(jnp.float32)))
    assert abs(drop_frac - p_host) < 0.08, drop_frac   # statistical check

    # Eval mode is identity.
    mod.training = False
    out_eval = jax.block_until_ready(mod(x, drop_key))
    assert bool(jnp.array_equal(out_eval, x))

    print("KERNEL_OK")
</pallas_src>

<mosaic_0001>
module attributes {stable_mosaic.version = 11 : i64} {
  func.func @_adaptive_dropout_kernel(%arg0: i32, %arg1: i32, %arg2: memref<1xf32, #tpu.memory_space<smem>>, %arg3: memref<16x128xf32, #tpu.memory_space<vmem>>, %arg4: memref<16x128xi32, #tpu.memory_space<vmem>>, %arg5: memref<16x128xf32, #tpu.memory_space<vmem>>, %arg6: memref<1x1xf32, #tpu.memory_space<vmem>>, %arg7: memref<1x128xf32, #tpu.memory_space<vmem>>, %arg8: memref<1x128xf32, #tpu.memory_space<vmem>>, %arg9: memref<1x1xf32, #tpu.memory_space<vmem>>, %arg10: memref<1x1xi32, #tpu.memory_space<vmem>>) attributes {dimension_semantics = [#tpu.dimension_semantics<arbitrary>, #tpu.dimension_semantics<arbitrary>], iteration_bounds = array<i64: 2, 1>, scalar_prefetch = 0 : i64, scratch_operands = 4 : i64, tpu.core_type = #tpu.core_type<tc>, window_params = [{transform_indices = @transform_0, window_bounds = array<i64: 1>}, {transform_indices = @transform_1, window_bounds = array<i64: 16, 128>}, {transform_indices = @transform_2, window_bounds = array<i64: 16, 128>}, {transform_indices = @transform_3, window_bounds = array<i64: 16, 128>}, {pipeline_mode = #tpu.pipeline_mode<synchronous>, transform_indices = @transform_4, window_bounds = array<i64: 1, 1>}]} {
    %c0_i32 = arith.constant 0 : i32
    %0 = arith.cmpi eq, %arg0, %c0_i32 : i32
    %1 = arith.extui %0 : i1 to i32
    %c0_i32_0 = arith.constant 0 : i32
    %2 = arith.cmpi ne, %1, %c0_i32_0 : i32
    scf.if %2 {
      %c0_i32_2 = arith.constant 0 : i32
      %6 = arith.cmpi eq, %arg1, %c0_i32_2 : i32
      %7 = arith.extui %6 : i1 to i32
      %c0_i32_3 = arith.constant 0 : i32
      %8 = arith.cmpi ne, %7, %c0_i32_3 : i32
      scf.if %8 {
        %cst_16 = arith.constant 0.000000e+00 : f32
        %24 = vector.broadcast %cst_16 : f32 to vector<1x128xf32>
        %c0_17 = arith.constant 0 : index
        %c0_18 = arith.constant 0 : index
        %25 = vector.load %arg7[%c0_17, %c0_18] : memref<1x128xf32, #tpu.memory_space<vmem>>, vector<1x128xf32>
        tpu.vector_store %arg7[%c0_17, %c0_18], %24 {strides = array<i32>} : memref<1x128xf32, #tpu.memory_space<vmem>>, vector<1x128xf32>,
        %cst_19 = arith.constant 0.000000e+00 : f32
        %26 = vector.broadcast %cst_19 : f32 to vector<1x128xf32>
        %c0_20 = arith.constant 0 : index
        %c0_21 = arith.constant 0 : index
        %27 = vector.load %arg8[%c0_20, %c0_21] : memref<1x128xf32, #tpu.memory_space<vmem>>, vector<1x128xf32>
        tpu.vector_store %arg8[%c0_20, %c0_21], %26 {strides = array<i32>} : memref<1x128xf32, #tpu.memory_space<vmem>>, vector<1x128xf32>,
      } else {
      }
      %c0 = arith.constant 0 : index
      %c0_4 = arith.constant 0 : index
      %9 = vector.load %arg3[%c0, %c0_4] : memref<16x128xf32, #tpu.memory_space<vmem>>, vector<16x128xf32>
      %c0_5 = arith.constant 0 : index
      %c0_6 = arith.constant 0 : index
      %10 = vector.load %arg7[%c0_5, %c0_6] : memref<1x128xf32, #tpu.memory_space<vmem>>, vector<1x128xf32>
      %cst = arith.constant dense<0.000000e+00> : vector<128xf32>
      %11 = vector.multi_reduction <add>, %9, %cst [0] : vector<16x128xf32> to vector<128xf32>
      %12 = vector.shape_cast %11 : vector<128xf32> to vector<1x128xf32>
      %13 = arith.addf %10, %12 : vector<1x128xf32>
      %c0_7 = arith.constant 0 : index
      %c0_8 = arith.constant 0 : index
      %14 = vector.load %arg7[%c0_7, %c0_8] : memref<1x128xf32, #tpu.memory_space<vmem>>, vector<1x128xf32>
      tpu.vector_store %arg7[%c0_7, %c0_8], %13 {strides = array<i32>} : memref<1x128xf32, #tpu.memory_space<vmem>>, vector<1x128xf32>,
      %c0_9 = arith.constant 0 : index
      %c0_10 = arith.constant 0 : index
      %15 = vector.load %arg8[%c0_9, %c0_10] : memref<1x128xf32, #tpu.memory_space<vmem>>, vector<1x128xf32>
      %16 = arith.mulf %9, %9 : vector<16x128xf32>
      %cst_11 = arith.constant dense<0.000000e+00> : vector<128xf32>
      %17 = vector.multi_reduction <add>, %16, %cst_11 [0] : vector<16x128xf32> to vector<128xf32>
      %18 = vector.shape_cast %17 : vector<128xf32> to vector<1x128xf32>
      %19 = arith.addf %15, %18 : vector<1x128xf32>
      %c0_12 = arith.constant 0 : index
      %c0_13 = arith.constant 0 : index
      %20 = vector.load %arg8[%c0_12, %c0_13] : memref<1x128xf32, #tpu.memory_space<vmem>>, vector<1x128xf32>
      tpu.vector_store %arg8[%c0_12, %c0_13], %19 {strides = array<i32>} : memref<1x128xf32, #tpu.memory_space<vmem>>, vector<1x128xf32>,
      %c0_i32_14 = arith.constant 0 : i32
      %21 = arith.cmpi eq, %arg1, %c0_i32_14 : i32
      %22 = arith.extui %21 : i1 to i32
      %c0_i32_15 = arith.constant 0 : i32
      %23 = arith.cmpi ne, %22, %c0_i32_15 : i32
      scf.if %23 {
        %c0_16 = arith.constant 0 : index
        %c0_17 = arith.constant 0 : index
        %24 = vector.load %arg7[%c0_16, %c0_17] : memref<1x128xf32, #tpu.memory_space<vmem>>, vector<1x128xf32>
        %cst_18 = arith.constant dense<0.000000e+00> : vector<1xf32>
        %25 = vector.multi_reduction <add>, %24, %cst_18 [1] : vector<1x128xf32> to vector<1xf32>
        %26 = vector.shape_cast %25 : vector<1xf32> to vector<1x1xf32>
        %c0_19 = arith.constant 0 : index
        %c0_20 = arith.constant 0 : index
        %27 = vector.load %arg8[%c0_19, %c0_20] : memref<1x128xf32, #tpu.memory_space<vmem>>, vector<1x128xf32>
        %cst_21 = arith.constant dense<0.000000e+00> : vector<1xf32>
        %28 = vector.multi_reduction <add>, %27, %cst_21 [1] : vector<1x128xf32> to vector<1xf32>
        %29 = vector.shape_cast %28 : vector<1xf32> to vector<1x1xf32>
        %cst_22 = arith.constant 2.048000e+03 : f32
        %30 = vector.broadcast %cst_22 : f32 to vector<1x1xf32>
        %31 = arith.divf %26, %30 : vector<1x1xf32>
        %cst_23 = arith.constant 2.048000e+03 : f32
        %32 = vector.broadcast %cst_23 : f32 to vector<1x1xf32>
        %33 = arith.mulf %32, %31 : vector<1x1xf32>
        %34 = arith.mulf %33, %31 : vector<1x1xf32>
        %35 = arith.subf %29, %34 : vector<1x1xf32>
        %cst_24 = arith.constant 2.048000e+03 : f32
        %cst_25 = arith.constant 1.000000e+00 : f32
        %36 = arith.subf %cst_24, %cst_25 : f32
        %37 = vector.broadcast %36 : f32 to vector<1x1xf32>
        %38 = arith.divf %35, %37 : vector<1x1xf32>
        %c0_26 = arith.constant 0 : index
        %39 = memref.load %arg2[%c0_26] : memref<1xf32, #tpu.memory_space<smem>>
        %cst_27 = arith.constant 5.000000e-02 : f32
        %40 = arith.subf %39, %cst_27 : f32
        %cst_28 = arith.constant 1.000000e-01 : f32
        %41 = arith.maximumf %cst_28, %40 : f32
        %cst_29 = arith.constant 5.000000e-02 : f32
        %42 = arith.addf %39, %cst_29 : f32
        %cst_30 = arith.constant 5.000000e-01 : f32
        %43 = arith.minimumf %cst_30, %42 : f32
        %cst_31 = arith.constant 1.000000e+00 : f32
        %44 = vector.broadcast %cst_31 : f32 to vector<1x1xf32>
        %45 = arith.cmpf ogt, %38, %44 : vector<1x1xf32>
        %46 = vector.broadcast %41 : f32 to vector<1x1xf32>
        %47 = vector.broadcast %43 : f32 to vector<1x1xf32>
        %48 = arith.select %45, %46, %47 : vector<1x1xi1>, vector<1x1xf32>
        %c0_32 = arith.constant 0 : index
        %c0_33 = arith.constant 0 : index
        %49 = vector.load %arg6[%c0_32, %c0_33] : memref<1x1xf32, #tpu.memory_space<vmem>>, vector<1x1xf32>
        tpu.vector_store %arg6[%c0_32, %c0_33], %48 {strides = array<i32>} : memref<1x1xf32, #tpu.memory_space<vmem>>, vector<1x1xf32>,
        %cst_34 = arith.constant 1.000000e+00 : f32
        %50 = vector.broadcast %cst_34 : f32 to vector<1x1xf32>
        %51 = arith.subf %50, %48 : vector<1x1xf32>
        %cst_35 = arith.constant 1.000000e+00 : f32
        %52 = vector.broadcast %cst_35 : f32 to vector<1x1xf32>
        %53 = arith.divf %52, %51 : vector<1x1xf32>
        %c0_36 = arith.constant 0 : index
        %c0_37 = arith.constant 0 : index
        %54 = vector.load %arg9[%c0_36, %c0_37] : memref<1x1xf32, #tpu.memory_space<vmem>>, vector<1x1xf32>
        tpu.vector_store %arg9[%c0_36, %c0_37], %53 {strides = array<i32>} : memref<1x1xf32, #tpu.memory_space<vmem>>, vector<1x1xf32>,
        %cst_38 = arith.constant 0x4B800000 : f32
        %55 = vector.broadcast %cst_38 : f32 to vector<1x1xf32>
        %56 = arith.mulf %48, %55 : vector<1x1xf32>
        %57 = arith.fptosi %56 : vector<1x1xf32> to vector<1x1xi32>
        %c0_39 = arith.constant 0 : index
        %c0_40 = arith.constant 0 : index
        %58 = vector.load %arg10[%c0_39, %c0_40] : memref<1x1xi32, #tpu.memory_space<vmem>>, vector<1x1xi32>
        tpu.vector_store %arg10[%c0_39, %c0_40], %57 {strides = array<i32>} : memref<1x1xi32, #tpu.memory_space<vmem>>, vector<1x1xi32>,
      } else {
      }
    } else {
    }
    %c1_i32 = arith.constant 1 : i32
    %3 = arith.cmpi eq, %arg0, %c1_i32 : i32
    %4 = arith.extui %3 : i1 to i32
    %c0_i32_1 = arith.constant 0 : i32
    %5 = arith.cmpi ne, %4, %c0_i32_1 : i32
    scf.if %5 {
      %c0 = arith.constant 0 : index
      %c0_2 = arith.constant 0 : index
      %6 = vector.load %arg3[%c0, %c0_2] : memref<16x128xf32, #tpu.memory_space<vmem>>, vector<16x128xf32>
      %c0_3 = arith.constant 0 : index
      %c0_4 = arith.constant 0 : index
      %7 = vector.load %arg4[%c0_3, %c0_4] : memref<16x128xi32, #tpu.memory_space<vmem>>, vector<16x128xi32>
      %c0_5 = arith.constant 0 : index
      %c0_6 = arith.constant 0 : index
      %8 = vector.load %arg10[%c0_5, %c0_6] : memref<1x1xi32, #tpu.memory_space<vmem>>, vector<1x1xi32>
      %9 = vector.broadcast %8 : vector<1x1xi32> to vector<16x128xi32>
      %10 = arith.cmpi sge, %7, %9 : vector<16x128xi32>
      %c0_7 = arith.constant 0 : index
      %c0_8 = arith.constant 0 : index
      %11 = vector.load %arg9[%c0_7, %c0_8] : memref<1x1xf32, #tpu.memory_space<vmem>>, vector<1x1xf32>
      %12 = vector.broadcast %11 : vector<1x1xf32> to vector<16x128xf32>
      %13 = arith.mulf %6, %12 : vector<16x128xf32>
      %cst = arith.constant 0.000000e+00 : f32
      %14 = vector.broadcast %cst : f32 to vector<16x128xf32>
      %15 = arith.select %10, %13, %14 : vector<16x128xi1>, vector<16x128xf32>
      %c0_9 = arith.constant 0 : index
      %c0_10 = arith.constant 0 : index
      %16 = vector.load %arg5[%c0_9, %c0_10] : memref<16x128xf32, #tpu.memory_space<vmem>>, vector<16x128xf32>
      tpu.vector_store %arg5[%c0_9, %c0_10], %15 {strides = array<i32>} : memref<16x128xf32, #tpu.memory_space<vmem>>, vector<16x128xf32>,
    } else {
    }
    return
  }
  func.func @transform_0(%arg0: i32, %arg1: i32) -> i32 {
    %c0_i32 = arith.constant 0 : i32
    %c0_i32_0 = arith.constant 0 : i32
    return %c0_i32 : i32
  }
  func.func @transform_1(%arg0: i32, %arg1: i32) -> (i32, i32) {
    %c0_i32 = arith.constant 0 : i32
    %c0_i32_0 = arith.constant 0 : i32
    return %arg1, %c0_i32 : i32, i32
  }
  func.func @transform_2(%arg0: i32, %arg1: i32) -> (i32, i32) {
    %0 = arith.muli %arg0, %arg1 : i32
    %c0_i32 = arith.constant 0 : i32
    %c0_i32_0 = arith.constant 0 : i32
    return %0, %c0_i32 : i32, i32
  }
  func.func @transform_3(%arg0: i32, %arg1: i32) -> (i32, i32) {
    %0 = arith.muli %arg0, %arg1 : i32
    %c0_i32 = arith.constant 0 : i32
    %c0_i32_0 = arith.constant 0 : i32
    return %0, %c0_i32 : i32, i32
  }
  func.func @transform_4(%arg0: i32, %arg1: i32) -> (i32, i32) {
    %c0_i32 = arith.constant 0 : i32
    %c0_i32_0 = arith.constant 0 : i32
    %c0_i32_1 = arith.constant 0 : i32
    return %c0_i32, %c0_i32_0 : i32, i32
  }
}

</mosaic_0001>

<llo_original>
// kernel: tpu_custom_call.1
$region0: #{tpu_custom_call.1}
  #allocation0 [shape = 'u32[]', space=smem, size = 0x4, offset = 0x4, fixed_abs, tag = 'smem constant byte address 0x4 - core index']
  #allocation1 [shape = 'u32[144,128]{1,0:T(1,128)}', space=vmem, size = 0x12000, scoped, tag = 'internal scratch']
  #allocation2 [shape = 'f32[1,128]{1,0:T(1,128)}', space=vmem, size = 0x200, scoped, tag = 'scratch operand']
  #allocation3 [shape = 'f32[1,128]{1,0:T(1,128)}', space=vmem, size = 0x200, scoped, tag = 'scratch operand']
  #allocation4 [shape = 'f32[1,1]{1,0:T(1,128)}', space=vmem, size = 0x200, scoped, tag = 'scratch operand']
  #allocation5 [shape = 's32[1,1]{1,0:T(1,128)}', space=vmem, size = 0x200, scoped, tag = 'scratch operand']
  #allocation6 [shape = 'f32[1]{0:T(128)S(6)}', space=smem, size = 0x200, scoped, tag = 'scoped memory for tpu_custom_call.1']
  %s0 = inlined_call_operand.<no memory space> [shape: f32[1], index: 0, kind: input, shape index: {}]
  %s1 = inlined_call_operand.hbm [shape: f32[16,128], index: 1, kind: input, shape index: {}]
  %s2 = inlined_call_operand.hbm [shape: s32[16,128], index: 2, kind: input, shape index: {}]
  %s3 = inlined_call_operand.hbm [shape: f32[16,128], index: 3, kind: output, shape index: {0}]
  %s4 = inlined_call_operand.hbm [shape: f32[1,1], index: 4, kind: output, shape index: {1}]
  %5 = xla_tuple %s3, %s4
  %s6 = sld [smem:[#allocation0]]
  $region77: #{tpu_custom_call.1} parent=0
    _
  %s8 = ssub.s32 1, %s6
  %s9 = scalar_select 0, %s8, %s6
  %10 = sst [smem:[#allocation6]] %s0
  $region1: #{tpu_custom_call.1} parent=0
    #allocation7 [shape = 'u8[8192]{0}', space=vmem, size = 0x2000, scoped, tag = 'input window, operand 1, single buffered']
    #allocation8 [shape = 's32[2]{0}', space=sflag, size = 0x8, scoped, tag = 'scoped memory for tpu_custom_call.1']
    #allocation9 [shape = 's32[2]{0}', space=sflag, size = 0x8, scoped, tag = 'scoped memory for tpu_custom_call.1']
    #allocation10 [shape = 'u8[16384]{0}', space=vmem, size = 0x4000, scoped, tag = 'input window, operand 2']
    #allocation11 [shape = 's32[2]{0}', space=sflag, size = 0x8, scoped, tag = 'scoped memory for tpu_custom_call.1']
    #allocation12 [shape = 'u8[16384]{0}', space=vmem, size = 0x4000, scoped, tag = 'output window, operand 0']
    #allocation13 [shape = 'u8[512]{0}', space=vmem, size = 0x400, scoped, tag = 'output window, operand 1, single buffered']
    #allocation14 [shape = 's32[1]{0}', space=sflag, size = 0x4, scoped, tag = 'scoped memory for tpu_custom_call.1']
    %11 = vsyncpa [#allocation8], 0
    %12 = vsyncpa [#allocation11], 0
    %s13 = scalar_lea.sflag [#allocation11], 1
    %14 = vsyncpa %s13, 0
    %15 = vsyncpa [#allocation9], 0
    %s16 = scalar_lea.sflag [#allocation9], 1
    %17 = vsyncpa %s16, 0
    %18 = vsyncpa [#allocation14], 0
    loop: start=0, step=1, limit=4
    $region2: #{tpu_custom_call.1} parent=1 // loop_pre_header
      _
    $region3: #{tpu_custom_call.1} parent=1 // loop_header
      %s20 = sphi 0, %s24
      %p21 = scmp.ge.s32.totalorder %s20, 4
      %s27 = sphi 0, %s39
      %s28 = sphi 0, %s35
      %s29 = sphi 0, %s27
      %s30 = sphi 0, %s28
      %s31 = sphi 0, %s29
      %s32 = sphi 0, %s30
      %s40 = sphi 0, %s40
      %s42 = sphi 0, %s40
      %s43 = sphi 0, %s42
      %s57 = sphi 0, %s43
      %s63 = sphi 0, %s65
      %s66 = sphi 0, %s63
      %s67 = sphi 0, %s66
      %s83 = sphi 0, %s67
      %s91 = sphi 0, %s93
      %s94 = sphi 0, %s91
      %s95 = sphi 0, %s94
      %s111 = sphi 0, %s95
      %s119 = sphi 0, %s121
      %s122 = sphi 0, %s119
      %s123 = sphi 0, %s122
      %s139 = sphi 0, %s123
      %s143 = sphi 0, %s143
      %s145 = sphi 0, %s143
      %s146 = sphi 0, %s145
      %s160 = sphi 0, %s146
    $region4: #{tpu_custom_call.1} parent=1 // loop_header_branch
      %23 = sbr.rel (%p21) target = $region8
    $region5: #{tpu_custom_call.1} parent=1 // loop_body
      %s25 = ssub.s32 %s20, 1
      %s26 = ssub.s32 %s20, 2
      %s33 = sadd.s32 1, %s28
      %p34 = scmp.ge.s32.totalorder %s33, 1
      %s35 = scalar_select %p34, 0, %s33
      %s36 = sadd.s32 1, %s27
      %s37 = scalar_select %p34, %s36, %s27
      %p38 = scmp.ge.s32.totalorder %s37, 2
      %s39 = scalar_select %p38, 0, %s37
      %s41 = sadd.s32 %s40, 1
      %p44 = scmp.eq.s32.totalorder %s20, 1
      %p45 = scmp.ne.s32.totalorder %s40, %s42
      %p46 = scmp.eq.s32.totalorder %s20, 0
      %p47 = por %p45, %p46
      %p48 = scmp.ne.s32.totalorder %s40, %s42
      %p49 = scmp.eq.s32.totalorder %s25, 1
      %p50 = por %p48, %p49
      %p51 = scmp.ne.s32.totalorder %s42, %s43
      %p52 = scmp.eq.s32.totalorder %s25, 0
      %p53 = por %p51, %p52
      %p54 = scmp.ne.s32.totalorder %s42, %s43
      %p55 = scmp.eq.s32.totalorder %s26, 1
      %p56 = por %p54, %p55
      %p58 = scmp.ne.s32.totalorder %s43, %s57
      %p59 = scmp.eq.s32.totalorder %s26, 0
      %p60 = por %p58, %p59
      %s61 = ssub.s32 %s28, %s35
      %p62 = scmp.eq.s32.totalorder %s61, 0
      %s64 = sadd.s32 %s63, 1
      %s65 = scalar_select %p62, %s63, %s64
      %p68 = pneg %p62
      %p69 = scmp.eq.s32.totalorder %s20, 1
      %p70 = por %p68, %p69
      %p71 = scmp.ne.s32.totalorder %s63, %s66
      %p72 = scmp.eq.s32.totalorder %s20, 0
      %p73 = por %p71, %p72
      %p74 = scmp.ne.s32.totalorder %s63, %s66
      %p75 = scmp.eq.s32.totalorder %s25, 1
      %p76 = por %p74, %p75
      %p77 = scmp.ne.s32.totalorder %s66, %s67
      %p78 = scmp.eq.s32.totalorder %s25, 0
      %p79 = por %p77, %p78
      %p80 = scmp.ne.s32.totalorder %s66, %s67
      %p81 = scmp.eq.s32.totalorder %s26, 1
      %p82 = por %p80, %p81
      %p84 = scmp.ne.s32.totalorder %s67, %s83
      %p85 = scmp.eq.s32.totalorder %s26, 0
      %p86 = por %p84, %p85
      %s87 = smul.u32 %s27, %s28
      %s88 = smul.u32 %s39, %s35
      %s89 = ssub.s32 %s87, %s88
      %p90 = scmp.eq.s32.totalorder %s89, 0
      %s92 = sadd.s32 %s91, 1
      %s93 = scalar_select %p90, %s91, %s92
      %p96 = pneg %p90
      %p97 = scmp.eq.s32.totalorder %s20, 1
      %p98 = por %p96, %p97
      %p99 = scmp.ne.s32.totalorder %s91, %s94
      %p100 = scmp.eq.s32.totalorder %s20, 0
      %p101 = por %p99, %p100
      %p102 = scmp.ne.s32.totalorder %s91, %s94
      %p103 = scmp.eq.s32.totalorder %s25, 1
      %p104 = por %p102, %p103
      %p105 = scmp.ne.s32.totalorder %s94, %s95
      %p106 = scmp.eq.s32.totalorder %s25, 0
      %p107 = por %p105, %p106
      %p108 = scmp.ne.s32.totalorder %s94, %s95
      %p109 = scmp.eq.s32.totalorder %s26, 1
      %p110 = por %p108, %p109
      %p112 = scmp.ne.s32.totalorder %s95, %s111
      %p113 = scmp.eq.s32.totalorder %s26, 0
      %p114 = por %p112, %p113
      %s115 = smul.u32 %s27, %s28
      %s116 = smul.u32 %s39, %s35
      %s117 = ssub.s32 %s115, %s116
      %p118 = scmp.eq.s32.totalorder %s117, 0
      %s120 = sadd.s32 %s119, 1
      %s121 = scalar_select %p118, %s119, %s120
      %p124 = pneg %p118
      %p125 = scmp.eq.s32.totalorder %s20, 1
      %p126 = por %p124, %p125
      %p127 = scmp.ne.s32.totalorder %s119, %s122
      %p128 = scmp.eq.s32.totalorder %s20, 0
      %p129 = por %p127, %p128
      %p130 = scmp.ne.s32.totalorder %s119, %s122
      %p131 = scmp.eq.s32.totalorder %s25, 1
      %p132 = por %p130, %p131
      %p133 = scmp.ne.s32.totalorder %s122, %s123
      %p134 = scmp.eq.s32.totalorder %s25, 0
      %p135 = por %p133, %p134
      %p136 = scmp.ne.s32.totalorder %s122, %s123
      %p137 = scmp.eq.s32.totalorder %s26, 1
      %p138 = por %p136, %p137
      %p140 = scmp.ne.s32.totalorder %s123, %s139
      %p141 = scmp.eq.s32.totalorder %s26, 0
      %p142 = por %p140, %p141
      %s144 = sadd.s32 %s143, 1
      %p147 = scmp.eq.s32.totalorder %s20, 1
      %p148 = scmp.ne.s32.totalorder %s143, %s145
      %p149 = scmp.eq.s32.totalorder %s20, 0
      %p150 = por %p148, %p149
      %p151 = scmp.ne.s32.totalorder %s143, %s145
      %p152 = scmp.eq.s32.totalorder %s25, 1
      %p153 = por %p151, %p152
      %p154 = scmp.ne.s32.totalorder %s145, %s146
      %p155 = scmp.eq.s32.totalorder %s25, 0
      %p156 = por %p154, %p155
      %p157 = scmp.ne.s32.totalorder %s145, %s146
      %p158 = scmp.eq.s32.totalorder %s26, 1
      %p159 = por %p157, %p158
      %p161 = scmp.ne.s32.totalorder %s146, %s160
      %p162 = scmp.eq.s32.totalorder %s26, 0
      %p163 = por %p161, %p162
      %p164 = scmp.le.s32.totalorder 1, %s20
      %p165 = scmp.lt.s32.totalorder %s20, 3
      %p166 = pnand %p164, %p165
      %p167 = pneg %p166
      // Predicated region
      $region9: #{tpu_custom_call.1} parent=5 // pred_check
        _
      $region10: #{tpu_custom_call.1} parent=5 // pred_check_branch
        %169 = sbr.rel (%p166) target = $region12
      $region11: #{tpu_custom_call.1} parent=5 // pred_region
        %s170 = ssub.s32 %s20, 1
        // Predicated region
        $region13: #{tpu_custom_call.1} parent=11 // pred_check
          %p171 = pneg %p53
        $region14: #{tpu_custom_call.1} parent=11 // pred_check_branch
          %173 = sbr.rel (%p171) target = $region16
        $region15: #{tpu_custom_call.1} parent=11 // pred_region
          _
        $region16: #{tpu_custom_call.1} parent=11 // pred_fallthru
          _
        // Predicated region
        $region17: #{tpu_custom_call.1} parent=11 // pred_check
          %p174 = pneg %p79
        $region18: #{tpu_custom_call.1} parent=11 // pred_check_branch
          %176 = sbr.rel (%p174) target = $region20
        $region19: #{tpu_custom_call.1} parent=11 // pred_region
          %s177 = smul.u32 2, %s30
          %s179 = ssub.s32 256, 256
          %180 = vsyncadd [#allocation8], %s179
          %s181 = smul.addr %s177, 128
          %s182 = scalar_lea.hbm %s1, %s181
          %s183 = sshll.u32 [#allocation7], 4
          %s184 = int_to_ptr.vmem [resolvable:$true] %s183
          %189 = dma.hbm_to_vmem [thread:$0]  %s182, 256, %s184, [#allocation8], 128, 128, 8
        $region20: #{tpu_custom_call.1} parent=11 // pred_fallthru
          _
      $region12: #{tpu_custom_call.1} parent=5 // pred_fallthru
        _
      %p190 = scmp.lt.s32.totalorder %s20, 2
      // Predicated region
      $region21: #{tpu_custom_call.1} parent=5 // pred_check
        %p191 = pneg %p190
      $region22: #{tpu_custom_call.1} parent=5 // pred_check_branch
        %193 = sbr.rel (%p191) target = $region24
      $region23: #{tpu_custom_call.1} parent=5 // pred_region
        // Predicated region
        $region25: #{tpu_custom_call.1} parent=23 // pred_check
          %p194 = pneg %p101
        $region26: #{tpu_custom_call.1} parent=23 // pred_check_branch
          %196 = sbr.rel (%p194) target = $region28
        $region27: #{tpu_custom_call.1} parent=23 // pred_region
          %s197 = sand.u32 %s91, 1
          %s198 = scalar_lea.sflag [#allocation11], %s197
          %s199 = sand.u32 %s91, 1
          %s200 = smul.addr %s199, 16
          %s201 = scalar_lea.vmem [#allocation10], %s200
          %s202 = smul.u32 %s27, %s28
          %s203 = smul.u32 2, %s202
          %s205 = ssub.s32 256, 256
          %206 = vsyncadd %s198, %s205
          %s207 = smul.addr %s203, 128
          %s208 = scalar_lea.hbm %s2, %s207
          %s209 = sshll.u32 %s201, 4
          %s210 = int_to_ptr.vmem [resolvable:$true] %s209
          %215 = dma.hbm_to_vmem [thread:$0]  %s208, 256, %s210, %s198, 128, 128, 8
        $region28: #{tpu_custom_call.1} parent=23 // pred_fallthru
          _
      $region24: #{tpu_custom_call.1} parent=5 // pred_fallthru
        _
      %p216 = scmp.le.s32.totalorder 1, %s20
      %p217 = scmp.lt.s32.totalorder %s20, 3
      %p218 = pnand %p216, %p217
      %p219 = pneg %p218
      // Predicated region
      $region29: #{tpu_custom_call.1} parent=5 // pred_check
        _
      $region30: #{tpu_custom_call.1} parent=5 // pred_check_branch
        %221 = sbr.rel (%p218) target = $region32
      $region31: #{tpu_custom_call.1} parent=5 // pred_region
        %s222 = ssub.s32 %s20, 1
        // Predicated region
        $region33: #{tpu_custom_call.1} parent=31 // pred_check
          %p223 = pneg %p79
        $region34: #{tpu_custom_call.1} parent=31 // pred_check_branch
          %225 = sbr.rel (%p223) target = $region36
        $region35: #{tpu_custom_call.1} parent=31 // pred_region
          %226 = dma.done [#allocation8], 256
        $region36: #{tpu_custom_call.1} parent=31 // pred_fallthru
          _
        %s227 = sand.u32 %s94, 1
        %s228 = scalar_lea.sflag [#allocation11], %s227
        %s229 = sand.u32 %s94, 1
        %s230 = smul.addr %s229, 16
        %s231 = scalar_lea.vmem [#allocation10], %s230
        // Predicated region
        $region37: #{tpu_custom_call.1} parent=31 // pred_check
          %p232 = pneg %p107
        $region38: #{tpu_custom_call.1} parent=31 // pred_check_branch
          %234 = sbr.rel (%p232) target = $region40
        $region39: #{tpu_custom_call.1} parent=31 // pred_region
          %235 = dma.done %s228, 256
        $region40: #{tpu_custom_call.1} parent=31 // pred_fallthru
          _
        %p236 = pneg %p53
        %p237 = pneg %p50
        %p238 = pneg %p79
        %p239 = pneg %p76
        %s240 = sand.u32 %s94, 1
        %s241 = scalar_lea.sflag [#allocation11], %s240
        %s242 = sand.u32 %s94, 1
        %s243 = smul.addr %s242, 16
        %s244 = scalar_lea.vmem [#allocation10], %s243
        %p245 = pneg %p107
        %p246 = pneg %p104
        %p247 = pneg %p135
        %p248 = pneg %p132
        %s249 = sand.u32 %s122, 1
        %s250 = scalar_lea.sflag [#allocation9], %s249
        %s251 = sand.u32 %s122, 1
        %s252 = smul.addr %s251, 16
        %s253 = scalar_lea.vmem [#allocation12], %s252
        %p254 = pneg %p156
        %p255 = pneg %p153
        %s256 = smul.u32 2, %s30
        %s257 = smul.u32 %s29, %s30
        %s258 = smul.u32 2, %s257
        %s259 = smul.u32 %s29, %s30
        %s260 = smul.u32 2, %s259
        %p261 = scmp.eq.s32.totalorder %s29, 0
        // Predicated region
        $region41: #{tpu_custom_call.1} parent=31 // pred_check
          %p262 = pneg %p261
        $region42: #{tpu_custom_call.1} parent=31 // pred_check_branch
          %264 = sbr.rel (%p262) target = $region44
        $region43: #{tpu_custom_call.1} parent=31 // pred_region
          %p265 = scmp.eq.s32.totalorder %s30, 0
          // Predicated region
          $region45: #{tpu_custom_call.1} parent=43 // pred_check
            %p266 = pneg %p265
          $region46: #{tpu_custom_call.1} parent=43 // pred_check_branch
            %268 = sbr.rel (%p266) target = $region48
          $region47: #{tpu_custom_call.1} parent=43 // pred_region
            %269 = vst [vmem:[#allocation2] sm:$0x1] 0.0
            %270 = vst [vmem:[#allocation3] sm:$0x1] 0.0
          $region48: #{tpu_custom_call.1} parent=43 // pred_fallthru
            _
          %v271 = vld [vmem:[#allocation7] sm:$0xff]
          %v272 = vld [vmem:[#allocation7 + $0x8] sm:$0xff]
          %v273 = vld [vmem:[#allocation2] sm:$0x1]
          %v274 = vadd.f32 %v271, %v272
          %v275 = vrot.slane %v274, 4
          %v276 = vadd.f32 %v274, %v275
          %v277 = vrot.slane %v276, 2
          %v278 = vadd.f32 %v276, %v277
          %v279 = vrot.slane %v278, 1
          %v280 = vadd.f32 %v278, %v279
          %v281 = vadd.f32 %v273, %v280
          %282 = vst [vmem:[#allocation2] sm:$0x1] %v281
          %v283 = vld [vmem:[#allocation3] sm:$0x1]
          %v284 = vmul.f32 %v271, %v271
          %v285 = vmul.f32 %v272, %v272
          %v286 = vadd.f32 %v284, %v285
          %v287 = vrot.slane %v286, 4
          %v288 = vadd.f32 %v286, %v287
          %v289 = vrot.slane %v288, 2
          %v290 = vadd.f32 %v288, %v289
          %v291 = vrot.slane %v290, 1
          %v292 = vadd.f32 %v290, %v291
          %v293 = vadd.f32 %v283, %v292
          %294 = vst [vmem:[#allocation3] sm:$0x1] %v293
          // Predicated region
          $region49: #{tpu_custom_call.1} parent=43 // pred_check
            %p295 = pneg %p265
          $region50: #{tpu_custom_call.1} parent=43 // pred_check_branch
            %297 = sbr.rel (%p295) target = $region52
          $region51: #{tpu_custom_call.1} parent=43 // pred_region
            %v298 = vld [vmem:[#allocation2] sm:$0x1]
            %vm299 = vcmask 1040384
            %v300 = vsel %vm299, %v298, 0.0
            %301 = vadd.xlane.f32.xlu0 %v300
            %v302 = vpop.xlane.xlu0 %301
            %v303 = vld [vmem:[#allocation3] sm:$0x1]
            %v304 = vsel %vm299, %v303, 0.0
            %305 = vadd.xlane.f32.xlu0 %v304
            %v306 = vpop.xlane.xlu0 %305
            %v307 = vrcp.pop 2048.0
            %v308 = vmul.f32 %v302, %v307
            %v309 = vmul.f32 %v308, 2048.0
            %v310 = vmul.f32 %v309, %v308
            %v311 = vsub.f32 %v306, %v310
            %v312 = vrcp.pop 2047.0
            %v313 = vmul.f32 %v311, %v312
            %s314 = sld [smem:[#allocation6]]
            %s315 = ssub.f32 %s314, 0.05
            %s316 = smax.f32 %s315, 0.1
            %s317 = sadd.f32 %s314, 0.05
            %s318 = smin.f32 %s317, 0.5
            %vm319 = vcmp.gt.f32.partialorder %v313, 1.0
            %v320 = vstv %s316
            %v321 = vstv %s318
            %v322 = vsel %vm319, %v320, %v321
            %vm323 = vcmask 0
            %324 = vst.msk [vmem:[#allocation13] sm:$0x1] %vm323, %v322
            %v325 = vsub.f32 1.0, %v322
            %v326 = vrcp.pop %v325
            %v327 = vmul.f32 1.0, %v326
            %328 = vst.msk [vmem:[#allocation4] sm:$0x1] %vm323, %v327
            %v329 = vmul.f32 %v322, 16777216.0
            %v330 = vcvt.f32.s32.to.zero.pseudo %v329
            %331 = vst.msk [vmem:[#allocation5] sm:$0x1] %vm323, %v330
          $region52: #{tpu_custom_call.1} parent=43 // pred_fallthru
            _
        $region44: #{tpu_custom_call.1} parent=31 // pred_fallthru
          _
        %p332 = scmp.eq.s32.totalorder %s29, 1
        // Predicated region
        $region53: #{tpu_custom_call.1} parent=31 // pred_check
          %p333 = pneg %p332
        $region54: #{tpu_custom_call.1} parent=31 // pred_check_branch
          %335 = sbr.rel (%p333) target = $region56
        $region55: #{tpu_custom_call.1} parent=31 // pred_region
          %v336 = vld [vmem:[#allocation7] sm:$0xff]
          %v337 = vld [vmem:[#allocation7 + $0x8] sm:$0xff]
          %v338 = vld [vmem:[%s231] sm:$0xff]
          %v339 = vld [vmem:[%s231 + $0x8] sm:$0xff]
          %v340 = vld [vmem:[#allocation5] sm:$0x1]
          %v341 = vlaneseq
          %v342 = vshrl.u32 %v341, 7
          %v343 = vsub.s32 0, %v342
          %v344 = vrot.slane %v340, %v343
          %345 = vset.pattern.permute.xlu0 0
          %346 = vperm.xlu0 %345, %v344
          %v347 = vpop.permute.xlu0 %346
          %vm348 = vcmp.ge.s32.totalorder %v338, %v347
          %vm349 = vcmp.ge.s32.totalorder %v339, %v347
          %v350 = vld [vmem:[#allocation4] sm:$0x1]
          %v352 = vlaneseq
          %v353 = vshrl.u32 %v352, 7
          %v354 = vsub.s32 0, %v353
          %v355 = vrot.slane %v350, %v354
          %356 = vset.pattern.permute.xlu0 0
          %357 = vperm.xlu0 %356, %v355
          %v358 = vpop.permute.xlu0 %357
          %v360 = vmul.f32 %v336, %v358
          %v361 = vmul.f32 %v337, %v358
          %v362 = vsel %vm348, %v360, 0.0
          %v363 = vsel %vm349, %v361, 0.0
          %364 = vst [vmem:[%s253] sm:$0xff] %v362
          %365 = vst [vmem:[%s253 + $0x8] sm:$0xff] %v363
        $region56: #{tpu_custom_call.1} parent=31 // pred_fallthru
          _
        %s366 = sand.u32 %s122, 1
        %s367 = scalar_lea.sflag [#allocation9], %s366
        %s368 = sand.u32 %s122, 1
        %s369 = smul.addr %s368, 16
        %s370 = scalar_lea.vmem [#allocation12], %s369
        // Predicated region
        $region57: #{tpu_custom_call.1} parent=31 // pred_check
          %p371 = pneg %p132
        $region58: #{tpu_custom_call.1} parent=31 // pred_check_branch
          %373 = sbr.rel (%p371) target = $region60
        $region59: #{tpu_custom_call.1} parent=31 // pred_region
          %s374 = smul.u32 %s29, %s30
          %s375 = smul.u32 2, %s374
          %s377 = ssub.s32 256, 256
          %378 = vsyncadd %s367, %s377
          %s379 = smul.addr %s375, 128
          %s380 = scalar_lea.hbm %s3, %s379
          %s381 = sshll.u32 %s370, 4
          %s382 = int_to_ptr.vmem [resolvable:$true] %s381
          %387 = dma.vmem_to_hbm [thread:$0]  %s382, 256, %s380, %s367, 128, 128, 8
        $region60: #{tpu_custom_call.1} parent=31 // pred_fallthru
          _
        // Predicated region
        $region61: #{tpu_custom_call.1} parent=31 // pred_check
          %p388 = pneg %p153
        $region62: #{tpu_custom_call.1} parent=31 // pred_check_branch
          %390 = sbr.rel (%p388) target = $region64
        $region63: #{tpu_custom_call.1} parent=31 // pred_region
          %s392 = ssub.s32 16, 16
          %393 = vsyncadd [#allocation14], %s392
          %s395 = sshll.u32 [#allocation13], 4
          %s396 = int_to_ptr.vmem [resolvable:$true] %s395
          %398 = dma.vmem_to_hbm [thread:$0]  %s396, 16, %s4, [#allocation14]
        $region64: #{tpu_custom_call.1} parent=31 // pred_fallthru
          _
        // Predicated region
        $region65: #{tpu_custom_call.1} parent=31 // pred_check
          %p399 = pneg %p153
        $region66: #{tpu_custom_call.1} parent=31 // pred_check_branch
          %401 = sbr.rel (%p399) target = $region68
        $region67: #{tpu_custom_call.1} parent=31 // pred_region
          %402 = dma.done [#allocation14], 16
        $region68: #{tpu_custom_call.1} parent=31 // pred_fallthru
          _
      $region32: #{tpu_custom_call.1} parent=5 // pred_fallthru
        _
      %p403 = scmp.le.s32.totalorder 2, %s20
      // Predicated region
      $region69: #{tpu_custom_call.1} parent=5 // pred_check
        %p404 = pneg %p403
      $region70: #{tpu_custom_call.1} parent=5 // pred_check_branch
        %406 = sbr.rel (%p404) target = $region72
      $region71: #{tpu_custom_call.1} parent=5 // pred_region
        %s407 = ssub.s32 %s20, 2
        // Predicated region
        $region73: #{tpu_custom_call.1} parent=71 // pred_check
          %p408 = pneg %p138
        $region74: #{tpu_custom_call.1} parent=71 // pred_check_branch
          %410 = sbr.rel (%p408) target = $region76
        $region75: #{tpu_custom_call.1} parent=71 // pred_region
          %s411 = sand.u32 %s123, 1
          %s412 = scalar_lea.sflag [#allocation9], %s411
          %s413 = sand.u32 %s123, 1
          %s414 = smul.addr %s413, 16
          %s415 = scalar_lea.vmem [#allocation12], %s414
          %416 = dma.done %s412, 256
        $region76: #{tpu_custom_call.1} parent=71 // pred_fallthru
          _
      $region72: #{tpu_custom_call.1} parent=5 // pred_fallthru
        _
    $region6: #{tpu_custom_call.1} parent=1 // loop_footer
      %s24 = sadd.s32 1, %s20
    $region7: #{tpu_custom_call.1} parent=1 // loop_footer_branch
      %19 = sbr.rel target = $region3
    $region8: #{tpu_custom_call.1} parent=1 // loop_exit
      _
    %417 = vsyncpa [#allocation8], 1
    %s418 = scalar_lea.sflag [#allocation8], 1
    %419 = vsyncpa %s418, 1
    %420 = vsyncpa [#allocation11], 1
    %s421 = scalar_lea.sflag [#allocation11], 1
    %422 = vsyncpa %s421, 1
    %423 = vsyncpa [#allocation9], 1
    %s424 = scalar_lea.sflag [#allocation9], 1
    %425 = vsyncpa %s424, 1
    %426 = vsyncpa [#allocation14], 1

</llo_original>
